<compile_context>
chip_gen: v5e
topology: v5e:2x2
jax: 0.10.0
libtpu: 0.0.40
codegen_flags: <defaults>
</compile_context>

<pallas_src>
import jax
import jax.numpy as jnp
from jax.experimental import pallas as pl
from jax.experimental.pallas import tpu as pltpu


# ----------------------------- fused network kernel -----------------------------
def _make_fused_kernel(num_layers):
    """Builds a kernel: refs = (x, [w_ih^T, w_hh^T, b]*L, fc_w^T, fc_b, y)."""

    def kernel(*refs):
        x_ref = refs[0]
        y_ref = refs[-1]
        wfc_ref = refs[1 + 3 * num_layers]
        bfc_ref = refs[2 + 3 * num_layers]

        B, T, D = x_ref.shape
        # (B, T, D) -> (B*T, D): pure tile relabel (second-minor dim is the
        # native 8-sublane extent), no data shuffle.
        cur = x_ref[...].reshape(B * T, D)

        for l in range(num_layers):
            wx_ref = refs[1 + 3 * l]   # (D_in, H)   == W_ih^T
            wh_ref = refs[2 + 3 * l]   # (H, H)      == W_hh^T
            b_ref = refs[3 + 3 * l]    # (1, H)      == b_ih + b_hh
            H = wh_ref.shape[1]

            # Hoisted input projection + fused bias: one M=B*T matmul,
            # off the sequential recurrence chain.
            p = (
                jnp.dot(cur, wx_ref[...], preferred_element_type=jnp.float32)
                + b_ref[...]
            ).reshape(B, T, H)

            wh = wh_ref[...]
            # t = 0: h_prev is zero, so h = tanh(p_0) exactly.
            h = jnp.tanh(p[:, 0, :])
            outs = [h]
            for t in range(1, T):  # static unroll; only h@W_hh + tanh is serial
                h = jnp.tanh(
                    p[:, t, :]
                    + jnp.dot(h, wh, preferred_element_type=jnp.float32)
                )
                outs.append(h)
            # Re-assemble all time steps so the next layer / fc sees one
            # lane-dense (B*T, H) operand (M=16 per MXU push).
            cur = jnp.stack(outs, axis=1).reshape(B * T, H)

        Ho = wfc_ref.shape[1]
        y = (
            jnp.dot(cur, wfc_ref[...], preferred_element_type=jnp.float32)
            + bfc_ref[...]
        )
        # Single store of the whole output slab.
        y_ref[...] = y.reshape(B, T, Ho).astype(y_ref.dtype)

    return kernel


def rnn_net_forward(prepared, x_btd):
    """Equivalent of RNNNet.forward: y = fc(rnn(x)[0]).  x_btd: (B, T, D).

    One pallas_call; everything resident in VMEM (tiny footprint, fits on
    v5e/v6e/v7x with huge margin -> no blocking / pipelining machinery).
    """
    layer_ws, fcw_t, fcb = prepared
    B, T, D = x_btd.shape
    Ho = fcw_t.shape[1]

    operands = [x_btd]
    for wx, wh, b in layer_ws:
        operands += [wx, wh, b]
    operands += [fcw_t, fcb]

    return pl.pallas_call(
        _make_fused_kernel(len(layer_ws)),
        out_shape=jax.ShapeDtypeStruct((B, T, Ho), x_btd.dtype),
        in_specs=[
            pl.BlockSpec(memory_space=pltpu.MemorySpace.VMEM) for _ in operands
        ],
        out_specs=pl.BlockSpec(memory_space=pltpu.MemorySpace.VMEM),
    )(*operands)


# ---------------------------- parameters / model ----------------------------
def init_params(key, input_size, hidden_size, layers):
    """Deterministic init matching PyTorch shapes: U(-1/sqrt(H), 1/sqrt(H))."""
    bound = 1.0 / jnp.sqrt(jnp.float32(hidden_size))
    params = {"rnn": [], "fc_w": None, "fc_b": None}
    keys = jax.random.split(key, 4 * layers + 2)
    for l in range(layers):
        d_in = input_size if l == 0 else hidden_size
        k0, k1, k2, k3 = keys[4 * l: 4 * l + 4]
        params["rnn"].append({
            "w_ih": jax.random.uniform(k0, (hidden_size, d_in), jnp.float32,
                                       -bound, bound),
            "w_hh": jax.random.uniform(k1, (hidden_size, hidden_size),
                                       jnp.float32, -bound, bound),
            "b_ih": jax.random.uniform(k2, (hidden_size,), jnp.float32,
                                       -bound, bound),
            "b_hh": jax.random.uniform(k3, (hidden_size,), jnp.float32,
                                       -bound, bound),
        })
    params["fc_w"] = jax.random.uniform(keys[-2], (hidden_size, hidden_size),
                                        jnp.float32, -bound, bound)
    params["fc_b"] = jax.random.uniform(keys[-1], (hidden_size,), jnp.float32,
                                        -bound, bound)
    return params


def prepare_params(params):
    """Precompute transposed weights and fused biases ONCE (not per forward)."""
    layer_ws = []
    for lp in params["rnn"]:
        layer_ws.append((
            jnp.transpose(lp["w_ih"]),                     # (D_in, H)  W_ih^T
            jnp.transpose(lp["w_hh"]),                     # (H, H)     W_hh^T
            (lp["b_ih"] + lp["b_hh"]).reshape(1, -1),      # (1, H)
        ))
    fcw_t = jnp.transpose(params["fc_w"])                  # (H, Ho)
    fcb = params["fc_b"].reshape(1, -1)                    # (1, Ho)
    return layer_ws, fcw_t, fcb


# --------------------------- pure-JAX reference ------------------------------
def _reference_forward(params, x_btd):
    x = x_btd
    for layer in params["rnn"]:
        B, T, _ = x.shape
        H = layer["w_hh"].shape[0]
        h0 = jnp.zeros((B, H), jnp.float32)

        def step(h, xt, layer=layer):
            h_new = jnp.tanh(xt @ layer["w_ih"].T + layer["b_ih"]
                             + h @ layer["w_hh"].T + layer["b_hh"])
            return h_new, h_new

        _, out = jax.lax.scan(step, h0, jnp.transpose(x, (1, 0, 2)))
        x = jnp.transpose(out, (1, 0, 2))
    return x @ params["fc_w"].T + params["fc_b"]


# ----------------------------------- main ------------------------------------
if __name__ == "__main__":
    sentence = ("if you want to build a ship, don't drum up people together to "
                "collect wood and don't assign them tasks and work, but rather "
                "teach them to long for the endless immensity of the sea.")
    dic_size = len(set(sentence))          # = 25
    input_size = dic_size
    hidden_size = dic_size
    layers = 2
    batch, seq = 2, 8

    key = jax.random.PRNGKey(0)
    k_param, k_data = jax.random.split(key)
    params = init_params(k_param, input_size, hidden_size, layers)
    prepared = prepare_params(params)      # transposes / bias fusion done once

    # one-hot character inputs, like the script's x_one_hot
    idx = jax.random.randint(k_data, (batch, seq), 0, dic_size)
    x = jax.nn.one_hot(idx, dic_size, dtype=jnp.float32)   # (B, T, dic_size)

    y = rnn_net_forward(prepared, x)
    y = jax.block_until_ready(y)

    y_ref = _reference_forward(params, x)
    assert y.shape == (batch, seq, hidden_size)
    assert jnp.allclose(y, y_ref, atol=1e-5, rtol=1e-5)

    print("KERNEL_OK")
</pallas_src>

<mosaic_0001>
module attributes {stable_mosaic.version = 11 : i64} {
  func.func @kernel(%arg0: memref<2x8x25xf32, #tpu.memory_space<vmem>>, %arg1: memref<25x25xf32, #tpu.memory_space<vmem>>, %arg2: memref<25x25xf32, #tpu.memory_space<vmem>>, %arg3: memref<1x25xf32, #tpu.memory_space<vmem>>, %arg4: memref<25x25xf32, #tpu.memory_space<vmem>>, %arg5: memref<25x25xf32, #tpu.memory_space<vmem>>, %arg6: memref<1x25xf32, #tpu.memory_space<vmem>>, %arg7: memref<25x25xf32, #tpu.memory_space<vmem>>, %arg8: memref<1x25xf32, #tpu.memory_space<vmem>>, %arg9: memref<2x8x25xf32, #tpu.memory_space<vmem>>) attributes {dimension_semantics = [], scalar_prefetch = 0 : i64, scratch_operands = 0 : i64, tpu.core_type = #tpu.core_type<tc>} {
    %c0 = arith.constant 0 : index
    %c0_0 = arith.constant 0 : index
    %c0_1 = arith.constant 0 : index
    %0 = vector.load %arg0[%c0, %c0_0, %c0_1] : memref<2x8x25xf32, #tpu.memory_space<vmem>>, vector<2x8x25xf32>
    %1 = vector.shape_cast %0 : vector<2x8x25xf32> to vector<16x25xf32>
    %c0_2 = arith.constant 0 : index
    %c0_3 = arith.constant 0 : index
    %2 = vector.load %arg1[%c0_2, %c0_3] : memref<25x25xf32, #tpu.memory_space<vmem>>, vector<25x25xf32>
    %cst = arith.constant dense<0.000000e+00> : vector<16x25xf32>
    %3 = tpu.matmul %1, %2, %cst {dimension_numbers = #tpu.dot_dimension_numbers<[1], [0], [0], [1], [0, 0, 1, 1], [], []>} : vector<16x25xf32>, vector<25x25xf32>, vector<16x25xf32> -> vector<16x25xf32>
    %c0_4 = arith.constant 0 : index
    %c0_5 = arith.constant 0 : index
    %4 = vector.load %arg3[%c0_4, %c0_5] : memref<1x25xf32, #tpu.memory_space<vmem>>, vector<1x25xf32>
    %5 = vector.broadcast %4 : vector<1x25xf32> to vector<16x25xf32>
    %6 = arith.addf %3, %5 : vector<16x25xf32>
    %7 = vector.shape_cast %6 : vector<16x25xf32> to vector<2x8x25xf32>
    %c0_6 = arith.constant 0 : index
    %c0_7 = arith.constant 0 : index
    %8 = vector.load %arg2[%c0_6, %c0_7] : memref<25x25xf32, #tpu.memory_space<vmem>>, vector<25x25xf32>
    %9 = vector.extract_strided_slice %7 {offsets = [0, 0, 0], sizes = [2, 1, 25], strides = [1, 1, 1]} : vector<2x8x25xf32> to vector<2x1x25xf32>
    %10 = vector.shape_cast %9 : vector<2x1x25xf32> to vector<2x25xf32>
    %11 = math.tanh %10 : vector<2x25xf32>
    %12 = vector.extract_strided_slice %7 {offsets = [0, 1, 0], sizes = [2, 1, 25], strides = [1, 1, 1]} : vector<2x8x25xf32> to vector<2x1x25xf32>
    %13 = vector.shape_cast %12 : vector<2x1x25xf32> to vector<2x25xf32>
    %cst_8 = arith.constant dense<0.000000e+00> : vector<2x25xf32>
    %14 = tpu.matmul %11, %8, %cst_8 {dimension_numbers = #tpu.dot_dimension_numbers<[1], [0], [0], [1], [0, 0, 1, 1], [], []>} : vector<2x25xf32>, vector<25x25xf32>, vector<2x25xf32> -> vector<2x25xf32>
    %15 = arith.addf %13, %14 : vector<2x25xf32>
    %16 = math.tanh %15 : vector<2x25xf32>
    %17 = vector.extract_strided_slice %7 {offsets = [0, 2, 0], sizes = [2, 1, 25], strides = [1, 1, 1]} : vector<2x8x25xf32> to vector<2x1x25xf32>
    %18 = vector.shape_cast %17 : vector<2x1x25xf32> to vector<2x25xf32>
    %cst_9 = arith.constant dense<0.000000e+00> : vector<2x25xf32>
    %19 = tpu.matmul %16, %8, %cst_9 {dimension_numbers = #tpu.dot_dimension_numbers<[1], [0], [0], [1], [0, 0, 1, 1], [], []>} : vector<2x25xf32>, vector<25x25xf32>, vector<2x25xf32> -> vector<2x25xf32>
    %20 = arith.addf %18, %19 : vector<2x25xf32>
    %21 = math.tanh %20 : vector<2x25xf32>
    %22 = vector.extract_strided_slice %7 {offsets = [0, 3, 0], sizes = [2, 1, 25], strides = [1, 1, 1]} : vector<2x8x25xf32> to vector<2x1x25xf32>
    %23 = vector.shape_cast %22 : vector<2x1x25xf32> to vector<2x25xf32>
    %cst_10 = arith.constant dense<0.000000e+00> : vector<2x25xf32>
    %24 = tpu.matmul %21, %8, %cst_10 {dimension_numbers = #tpu.dot_dimension_numbers<[1], [0], [0], [1], [0, 0, 1, 1], [], []>} : vector<2x25xf32>, vector<25x25xf32>, vector<2x25xf32> -> vector<2x25xf32>
    %25 = arith.addf %23, %24 : vector<2x25xf32>
    %26 = math.tanh %25 : vector<2x25xf32>
    %27 = vector.extract_strided_slice %7 {offsets = [0, 4, 0], sizes = [2, 1, 25], strides = [1, 1, 1]} : vector<2x8x25xf32> to vector<2x1x25xf32>
    %28 = vector.shape_cast %27 : vector<2x1x25xf32> to vector<2x25xf32>
    %cst_11 = arith.constant dense<0.000000e+00> : vector<2x25xf32>
    %29 = tpu.matmul %26, %8, %cst_11 {dimension_numbers = #tpu.dot_dimension_numbers<[1], [0], [0], [1], [0, 0, 1, 1], [], []>} : vector<2x25xf32>, vector<25x25xf32>, vector<2x25xf32> -> vector<2x25xf32>
    %30 = arith.addf %28, %29 : vector<2x25xf32>
    %31 = math.tanh %30 : vector<2x25xf32>
    %32 = vector.extract_strided_slice %7 {offsets = [0, 5, 0], sizes = [2, 1, 25], strides = [1, 1, 1]} : vector<2x8x25xf32> to vector<2x1x25xf32>
    %33 = vector.shape_cast %32 : vector<2x1x25xf32> to vector<2x25xf32>
    %cst_12 = arith.constant dense<0.000000e+00> : vector<2x25xf32>
    %34 = tpu.matmul %31, %8, %cst_12 {dimension_numbers = #tpu.dot_dimension_numbers<[1], [0], [0], [1], [0, 0, 1, 1], [], []>} : vector<2x25xf32>, vector<25x25xf32>, vector<2x25xf32> -> vector<2x25xf32>
    %35 = arith.addf %33, %34 : vector<2x25xf32>
    %36 = math.tanh %35 : vector<2x25xf32>
    %37 = vector.extract_strided_slice %7 {offsets = [0, 6, 0], sizes = [2, 1, 25], strides = [1, 1, 1]} : vector<2x8x25xf32> to vector<2x1x25xf32>
    %38 = vector.shape_cast %37 : vector<2x1x25xf32> to vector<2x25xf32>
    %cst_13 = arith.constant dense<0.000000e+00> : vector<2x25xf32>
    %39 = tpu.matmul %36, %8, %cst_13 {dimension_numbers = #tpu.dot_dimension_numbers<[1], [0], [0], [1], [0, 0, 1, 1], [], []>} : vector<2x25xf32>, vector<25x25xf32>, vector<2x25xf32> -> vector<2x25xf32>
    %40 = arith.addf %38, %39 : vector<2x25xf32>
    %41 = math.tanh %40 : vector<2x25xf32>
    %42 = vector.extract_strided_slice %7 {offsets = [0, 7, 0], sizes = [2, 1, 25], strides = [1, 1, 1]} : vector<2x8x25xf32> to vector<2x1x25xf32>
    %43 = vector.shape_cast %42 : vector<2x1x25xf32> to vector<2x25xf32>
    %cst_14 = arith.constant dense<0.000000e+00> : vector<2x25xf32>
    %44 = tpu.matmul %41, %8, %cst_14 {dimension_numbers = #tpu.dot_dimension_numbers<[1], [0], [0], [1], [0, 0, 1, 1], [], []>} : vector<2x25xf32>, vector<25x25xf32>, vector<2x25xf32> -> vector<2x25xf32>
    %45 = arith.addf %43, %44 : vector<2x25xf32>
    %46 = math.tanh %45 : vector<2x25xf32>
    %47 = vector.shape_cast %11 : vector<2x25xf32> to vector<2x1x25xf32>
    %48 = vector.shape_cast %16 : vector<2x25xf32> to vector<2x1x25xf32>
    %49 = vector.shape_cast %21 : vector<2x25xf32> to vector<2x1x25xf32>
    %50 = vector.shape_cast %26 : vector<2x25xf32> to vector<2x1x25xf32>
    %51 = vector.shape_cast %31 : vector<2x25xf32> to vector<2x1x25xf32>
    %52 = vector.shape_cast %36 : vector<2x25xf32> to vector<2x1x25xf32>
    %53 = vector.shape_cast %41 : vector<2x25xf32> to vector<2x1x25xf32>
    %54 = vector.shape_cast %46 : vector<2x25xf32> to vector<2x1x25xf32>
    %55 = tpu.concatenate %47, %48, %49, %50, %51, %52, %53, %54 in 1 : vector<2x1x25xf32>, vector<2x1x25xf32>, vector<2x1x25xf32>, vector<2x1x25xf32>, vector<2x1x25xf32>, vector<2x1x25xf32>, vector<2x1x25xf32>, vector<2x1x25xf32> -> vector<2x8x25xf32>
    %56 = vector.shape_cast %55 : vector<2x8x25xf32> to vector<16x25xf32>
    %c0_15 = arith.constant 0 : index
    %c0_16 = arith.constant 0 : index
    %57 = vector.load %arg4[%c0_15, %c0_16] : memref<25x25xf32, #tpu.memory_space<vmem>>, vector<25x25xf32>
    %cst_17 = arith.constant dense<0.000000e+00> : vector<16x25xf32>
    %58 = tpu.matmul %56, %57, %cst_17 {dimension_numbers = #tpu.dot_dimension_numbers<[1], [0], [0], [1], [0, 0, 1, 1], [], []>} : vector<16x25xf32>, vector<25x25xf32>, vector<16x25xf32> -> vector<16x25xf32>
    %c0_18 = arith.constant 0 : index
    %c0_19 = arith.constant 0 : index
    %59 = vector.load %arg6[%c0_18, %c0_19] : memref<1x25xf32, #tpu.memory_space<vmem>>, vector<1x25xf32>
    %60 = vector.broadcast %59 : vector<1x25xf32> to vector<16x25xf32>
    %61 = arith.addf %58, %60 : vector<16x25xf32>
    %62 = vector.shape_cast %61 : vector<16x25xf32> to vector<2x8x25xf32>
    %c0_20 = arith.constant 0 : index
    %c0_21 = arith.constant 0 : index
    %63 = vector.load %arg5[%c0_20, %c0_21] : memref<25x25xf32, #tpu.memory_space<vmem>>, vector<25x25xf32>
    %64 = vector.extract_strided_slice %62 {offsets = [0, 0, 0], sizes = [2, 1, 25], strides = [1, 1, 1]} : vector<2x8x25xf32> to vector<2x1x25xf32>
    %65 = vector.shape_cast %64 : vector<2x1x25xf32> to vector<2x25xf32>
    %66 = math.tanh %65 : vector<2x25xf32>
    %67 = vector.extract_strided_slice %62 {offsets = [0, 1, 0], sizes = [2, 1, 25], strides = [1, 1, 1]} : vector<2x8x25xf32> to vector<2x1x25xf32>
    %68 = vector.shape_cast %67 : vector<2x1x25xf32> to vector<2x25xf32>
    %cst_22 = arith.constant dense<0.000000e+00> : vector<2x25xf32>
    %69 = tpu.matmul %66, %63, %cst_22 {dimension_numbers = #tpu.dot_dimension_numbers<[1], [0], [0], [1], [0, 0, 1, 1], [], []>} : vector<2x25xf32>, vector<25x25xf32>, vector<2x25xf32> -> vector<2x25xf32>
    %70 = arith.addf %68, %69 : vector<2x25xf32>
    %71 = math.tanh %70 : vector<2x25xf32>
    %72 = vector.extract_strided_slice %62 {offsets = [0, 2, 0], sizes = [2, 1, 25], strides = [1, 1, 1]} : vector<2x8x25xf32> to vector<2x1x25xf32>
    %73 = vector.shape_cast %72 : vector<2x1x25xf32> to vector<2x25xf32>
    %cst_23 = arith.constant dense<0.000000e+00> : vector<2x25xf32>
    %74 = tpu.matmul %71, %63, %cst_23 {dimension_numbers = #tpu.dot_dimension_numbers<[1], [0], [0], [1], [0, 0, 1, 1], [], []>} : vector<2x25xf32>, vector<25x25xf32>, vector<2x25xf32> -> vector<2x25xf32>
    %75 = arith.addf %73, %74 : vector<2x25xf32>
    %76 = math.tanh %75 : vector<2x25xf32>
    %77 = vector.extract_strided_slice %62 {offsets = [0, 3, 0], sizes = [2, 1, 25], strides = [1, 1, 1]} : vector<2x8x25xf32> to vector<2x1x25xf32>
    %78 = vector.shape_cast %77 : vector<2x1x25xf32> to vector<2x25xf32>
    %cst_24 = arith.constant dense<0.000000e+00> : vector<2x25xf32>
    %79 = tpu.matmul %76, %63, %cst_24 {dimension_numbers = #tpu.dot_dimension_numbers<[1], [0], [0], [1], [0, 0, 1, 1], [], []>} : vector<2x25xf32>, vector<25x25xf32>, vector<2x25xf32> -> vector<2x25xf32>
    %80 = arith.addf %78, %79 : vector<2x25xf32>
    %81 = math.tanh %80 : vector<2x25xf32>
    %82 = vector.extract_strided_slice %62 {offsets = [0, 4, 0], sizes = [2, 1, 25], strides = [1, 1, 1]} : vector<2x8x25xf32> to vector<2x1x25xf32>
    %83 = vector.shape_cast %82 : vector<2x1x25xf32> to vector<2x25xf32>
    %cst_25 = arith.constant dense<0.000000e+00> : vector<2x25xf32>
    %84 = tpu.matmul %81, %63, %cst_25 {dimension_numbers = #tpu.dot_dimension_numbers<[1], [0], [0], [1], [0, 0, 1, 1], [], []>} : vector<2x25xf32>, vector<25x25xf32>, vector<2x25xf32> -> vector<2x25xf32>
    %85 = arith.addf %83, %84 : vector<2x25xf32>
    %86 = math.tanh %85 : vector<2x25xf32>
    %87 = vector.extract_strided_slice %62 {offsets = [0, 5, 0], sizes = [2, 1, 25], strides = [1, 1, 1]} : vector<2x8x25xf32> to vector<2x1x25xf32>
    %88 = vector.shape_cast %87 : vector<2x1x25xf32> to vector<2x25xf32>
    %cst_26 = arith.constant dense<0.000000e+00> : vector<2x25xf32>
    %89 = tpu.matmul %86, %63, %cst_26 {dimension_numbers = #tpu.dot_dimension_numbers<[1], [0], [0], [1], [0, 0, 1, 1], [], []>} : vector<2x25xf32>, vector<25x25xf32>, vector<2x25xf32> -> vector<2x25xf32>
    %90 = arith.addf %88, %89 : vector<2x25xf32>
    %91 = math.tanh %90 : vector<2x25xf32>
    %92 = vector.extract_strided_slice %62 {offsets = [0, 6, 0], sizes = [2, 1, 25], strides = [1, 1, 1]} : vector<2x8x25xf32> to vector<2x1x25xf32>
    %93 = vector.shape_cast %92 : vector<2x1x25xf32> to vector<2x25xf32>
    %cst_27 = arith.constant dense<0.000000e+00> : vector<2x25xf32>
    %94 = tpu.matmul %91, %63, %cst_27 {dimension_numbers = #tpu.dot_dimension_numbers<[1], [0], [0], [1], [0, 0, 1, 1], [], []>} : vector<2x25xf32>, vector<25x25xf32>, vector<2x25xf32> -> vector<2x25xf32>
    %95 = arith.addf %93, %94 : vector<2x25xf32>
    %96 = math.tanh %95 : vector<2x25xf32>
    %97 = vector.extract_strided_slice %62 {offsets = [0, 7, 0], sizes = [2, 1, 25], strides = [1, 1, 1]} : vector<2x8x25xf32> to vector<2x1x25xf32>
    %98 = vector.shape_cast %97 : vector<2x1x25xf32> to vector<2x25xf32>
    %cst_28 = arith.constant dense<0.000000e+00> : vector<2x25xf32>
    %99 = tpu.matmul %96, %63, %cst_28 {dimension_numbers = #tpu.dot_dimension_numbers<[1], [0], [0], [1], [0, 0, 1, 1], [], []>} : vector<2x25xf32>, vector<25x25xf32>, vector<2x25xf32> -> vector<2x25xf32>
    %100 = arith.addf %98, %99 : vector<2x25xf32>
    %101 = math.tanh %100 : vector<2x25xf32>
    %102 = vector.shape_cast %66 : vector<2x25xf32> to vector<2x1x25xf32>
    %103 = vector.shape_cast %71 : vector<2x25xf32> to vector<2x1x25xf32>
    %104 = vector.shape_cast %76 : vector<2x25xf32> to vector<2x1x25xf32>
    %105 = vector.shape_cast %81 : vector<2x25xf32> to vector<2x1x25xf32>
    %106 = vector.shape_cast %86 : vector<2x25xf32> to vector<2x1x25xf32>
    %107 = vector.shape_cast %91 : vector<2x25xf32> to vector<2x1x25xf32>
    %108 = vector.shape_cast %96 : vector<2x25xf32> to vector<2x1x25xf32>
    %109 = vector.shape_cast %101 : vector<2x25xf32> to vector<2x1x25xf32>
    %110 = tpu.concatenate %102, %103, %104, %105, %106, %107, %108, %109 in 1 : vector<2x1x25xf32>, vector<2x1x25xf32>, vector<2x1x25xf32>, vector<2x1x25xf32>, vector<2x1x25xf32>, vector<2x1x25xf32>, vector<2x1x25xf32>, vector<2x1x25xf32> -> vector<2x8x25xf32>
    %111 = vector.shape_cast %110 : vector<2x8x25xf32> to vector<16x25xf32>
    %c0_29 = arith.constant 0 : index
    %c0_30 = arith.constant 0 : index
    %112 = vector.load %arg7[%c0_29, %c0_30] : memref<25x25xf32, #tpu.memory_space<vmem>>, vector<25x25xf32>
    %cst_31 = arith.constant dense<0.000000e+00> : vector<16x25xf32>
    %113 = tpu.matmul %111, %112, %cst_31 {dimension_numbers = #tpu.dot_dimension_numbers<[1], [0], [0], [1], [0, 0, 1, 1], [], []>} : vector<16x25xf32>, vector<25x25xf32>, vector<16x25xf32> -> vector<16x25xf32>
    %c0_32 = arith.constant 0 : index
    %c0_33 = arith.constant 0 : index
    %114 = vector.load %arg8[%c0_32, %c0_33] : memref<1x25xf32, #tpu.memory_space<vmem>>, vector<1x25xf32>
    %115 = vector.broadcast %114 : vector<1x25xf32> to vector<16x25xf32>
    %116 = arith.addf %113, %115 : vector<16x25xf32>
    %117 = vector.shape_cast %116 : vector<16x25xf32> to vector<2x8x25xf32>
    %c0_34 = arith.constant 0 : index
    %c0_35 = arith.constant 0 : index
    %c0_36 = arith.constant 0 : index
    %118 = vector.load %arg9[%c0_34, %c0_35, %c0_36] : memref<2x8x25xf32, #tpu.memory_space<vmem>>, vector<2x8x25xf32>
    tpu.vector_store %arg9[%c0_34, %c0_35, %c0_36], %117 {strides = array<i32>} : memref<2x8x25xf32, #tpu.memory_space<vmem>>, vector<2x8x25xf32>,
    return
  }
}

</mosaic_0001>

<llo_original>
// kernel: tpu_custom_call.1
$region0: #{tpu_custom_call.1}
  #allocation0 [shape = 'u32[]', space=smem, size = 0x4, offset = 0x4, fixed_abs, tag = 'smem constant byte address 0x4 - core index']
  #allocation1 [shape = 'u32[72,128]{1,0:T(1,128)}', space=vmem, size = 0x9000, scoped, tag = 'internal scratch']
  %s0 = inlined_call_operand.hbm [shape: f32[2,8,25], index: 0, kind: input, shape index: {}]
  %s1 = inlined_call_operand.hbm [shape: f32[25,25], index: 1, kind: input, shape index: {}]
  %s2 = inlined_call_operand.hbm [shape: f32[25,25], index: 2, kind: input, shape index: {}]
  %s3 = inlined_call_operand.vmem [shape: f32[1,25], index: 3, kind: input, shape index: {}]
  %s4 = inlined_call_operand.hbm [shape: f32[25,25], index: 4, kind: input, shape index: {}]
  %s5 = inlined_call_operand.hbm [shape: f32[25,25], index: 5, kind: input, shape index: {}]
  %s6 = inlined_call_operand.vmem [shape: f32[1,25], index: 6, kind: input, shape index: {}]
  %s7 = inlined_call_operand.hbm [shape: f32[25,25], index: 7, kind: input, shape index: {}]
  %s8 = inlined_call_operand.vmem [shape: f32[1,25], index: 8, kind: input, shape index: {}]
  %s9 = inlined_call_operand.hbm [shape: f32[2,8,25], index: 9, kind: output, shape index: {}]
  %s10 = sld [smem:[#allocation0]]
  $region70: #{tpu_custom_call.1} parent=0
    _
  %s12 = ssub.s32 1, %s10
  %s13 = scalar_select 0, %s12, %s10
  $region1: #{tpu_custom_call.1} parent=0
    #allocation2 [shape = 'u8[8192]{0}', space=vmem, size = 0x2000, scoped, tag = 'input window, operand 0, single buffered']
    #allocation3 [shape = 's32[1]{0}', space=sflag, size = 0x4, scoped, tag = 'scoped memory for tpu_custom_call.1']
    #allocation4 [shape = 's32[1]{0}', space=sflag, size = 0x4, scoped, tag = 'scoped memory for tpu_custom_call.1']
    #allocation5 [shape = 'u8[16384]{0}', space=vmem, size = 0x4000, scoped, tag = 'input window, operand 1, single buffered']
    #allocation6 [shape = 's32[1]{0}', space=sflag, size = 0x4, scoped, tag = 'scoped memory for tpu_custom_call.1']
    #allocation7 [shape = 'u8[16384]{0}', space=vmem, size = 0x4000, scoped, tag = 'input window, operand 2, single buffered']
    #allocation8 [shape = 'u8[16384]{0}', space=vmem, size = 0x4000, scoped, tag = 'input window, operand 4, single buffered']
    #allocation9 [shape = 's32[1]{0}', space=sflag, size = 0x4, scoped, tag = 'scoped memory for tpu_custom_call.1']
    #allocation10 [shape = 'u8[16384]{0}', space=vmem, size = 0x4000, scoped, tag = 'input window, operand 5, single buffered']
    #allocation11 [shape = 'u8[16384]{0}', space=vmem, size = 0x4000, scoped, tag = 'input window, operand 7, single buffered']
    #allocation12 [shape = 's32[1]{0}', space=sflag, size = 0x4, scoped, tag = 'scoped memory for tpu_custom_call.1']
    #allocation13 [shape = 'u8[8192]{0}', space=vmem, size = 0x2000, scoped, tag = 'output window, operand 0, single buffered']
    %14 = vsyncpa [#allocation3], 0
    %15 = vsyncpa [#allocation6], 0
    %16 = vsyncpa [#allocation9], 0
    %17 = vsyncpa [#allocation12], 0
    %18 = vsyncpa [#allocation4], 0
    // Predicated region
    $region2: #{tpu_custom_call.1} parent=1 // pred_check
      _
    $region3: #{tpu_custom_call.1} parent=1 // pred_check_branch
      %20 = sbr.rel (0) target = $region5
    $region4: #{tpu_custom_call.1} parent=1 // pred_region
      %22 = vsyncadd [#allocation3], 0
      %s23 = sshll.u32 %s0, 4
      %s24 = int_to_ptr.hbm [resolvable:$true] %s23
      %s25 = sshll.u32 [#allocation2], 4
      %s26 = int_to_ptr.vmem [resolvable:$true] %s25
      %31 = dma.hbm_to_vmem [thread:$0]  %s24, 256, %s26, [#allocation3], 128, 128, 8
    $region5: #{tpu_custom_call.1} parent=1 // pred_fallthru
      _
    // Predicated region
    $region6: #{tpu_custom_call.1} parent=1 // pred_check
      _
    $region7: #{tpu_custom_call.1} parent=1 // pred_check_branch
      %33 = sbr.rel (0) target = $region9
    $region8: #{tpu_custom_call.1} parent=1 // pred_region
      %35 = vsyncadd [#allocation6], 0
      %s36 = sshll.u32 %s1, 4
      %s37 = int_to_ptr.hbm [resolvable:$true] %s36
      %s38 = sshll.u32 [#allocation5], 4
      %s39 = int_to_ptr.vmem [resolvable:$true] %s38
      %44 = dma.hbm_to_vmem [thread:$0]  %s37, 512, %s39, [#allocation6], 128, 128, 8
    $region9: #{tpu_custom_call.1} parent=1 // pred_fallthru
      _
    // Predicated region
    $region10: #{tpu_custom_call.1} parent=1 // pred_check
      _
    $region11: #{tpu_custom_call.1} parent=1 // pred_check_branch
      %46 = sbr.rel (0) target = $region13
    $region12: #{tpu_custom_call.1} parent=1 // pred_region
      %48 = vsyncadd [#allocation6], 0
      %s49 = sshll.u32 %s2, 4
      %s50 = int_to_ptr.hbm [resolvable:$true] %s49
      %s51 = sshll.u32 [#allocation7], 4
      %s52 = int_to_ptr.vmem [resolvable:$true] %s51
      %57 = dma.hbm_to_vmem [thread:$0]  %s50, 512, %s52, [#allocation6], 128, 128, 8
    $region13: #{tpu_custom_call.1} parent=1 // pred_fallthru
      _
    // Predicated region
    $region14: #{tpu_custom_call.1} parent=1 // pred_check
      _
    $region15: #{tpu_custom_call.1} parent=1 // pred_check_branch
      %59 = sbr.rel (0) target = $region17
    $region16: #{tpu_custom_call.1} parent=1 // pred_region
      _
    $region17: #{tpu_custom_call.1} parent=1 // pred_fallthru
      _
    // Predicated region
    $region18: #{tpu_custom_call.1} parent=1 // pred_check
      _
    $region19: #{tpu_custom_call.1} parent=1 // pred_check_branch
      %61 = sbr.rel (0) target = $region21
    $region20: #{tpu_custom_call.1} parent=1 // pred_region
      %63 = vsyncadd [#allocation9], 0
      %s64 = sshll.u32 %s4, 4
      %s65 = int_to_ptr.hbm [resolvable:$true] %s64
      %s66 = sshll.u32 [#allocation8], 4
      %s67 = int_to_ptr.vmem [resolvable:$true] %s66
      %72 = dma.hbm_to_vmem [thread:$0]  %s65, 512, %s67, [#allocation9], 128, 128, 8
    $region21: #{tpu_custom_call.1} parent=1 // pred_fallthru
      _
    // Predicated region
    $region22: #{tpu_custom_call.1} parent=1 // pred_check
      _
    $region23: #{tpu_custom_call.1} parent=1 // pred_check_branch
      %74 = sbr.rel (0) target = $region25
    $region24: #{tpu_custom_call.1} parent=1 // pred_region
      %76 = vsyncadd [#allocation9], 0
      %s77 = sshll.u32 %s5, 4
      %s78 = int_to_ptr.hbm [resolvable:$true] %s77
      %s79 = sshll.u32 [#allocation10], 4
      %s80 = int_to_ptr.vmem [resolvable:$true] %s79
      %85 = dma.hbm_to_vmem [thread:$0]  %s78, 512, %s80, [#allocation9], 128, 128, 8
    $region25: #{tpu_custom_call.1} parent=1 // pred_fallthru
      _
    // Predicated region
    $region26: #{tpu_custom_call.1} parent=1 // pred_check
      _
    $region27: #{tpu_custom_call.1} parent=1 // pred_check_branch
      %87 = sbr.rel (0) target = $region29
    $region28: #{tpu_custom_call.1} parent=1 // pred_region
      _
    $region29: #{tpu_custom_call.1} parent=1 // pred_fallthru
      _
    // Predicated region
    $region30: #{tpu_custom_call.1} parent=1 // pred_check
      _
    $region31: #{tpu_custom_call.1} parent=1 // pred_check_branch
      %89 = sbr.rel (0) target = $region33
    $region32: #{tpu_custom_call.1} parent=1 // pred_region
      %91 = vsyncadd [#allocation12], 0
      %s92 = sshll.u32 %s7, 4
      %s93 = int_to_ptr.hbm [resolvable:$true] %s92
      %s94 = sshll.u32 [#allocation11], 4
      %s95 = int_to_ptr.vmem [resolvable:$true] %s94
      %100 = dma.hbm_to_vmem [thread:$0]  %s93, 512, %s95, [#allocation12], 128, 128, 8
    $region33: #{tpu_custom_call.1} parent=1 // pred_fallthru
      _
    // Predicated region
    $region34: #{tpu_custom_call.1} parent=1 // pred_check
      _
    $region35: #{tpu_custom_call.1} parent=1 // pred_check_branch
      %102 = sbr.rel (0) target = $region37
    $region36: #{tpu_custom_call.1} parent=1 // pred_region
      _
    $region37: #{tpu_custom_call.1} parent=1 // pred_fallthru
      _
    // Predicated region
    $region38: #{tpu_custom_call.1} parent=1 // pred_check
      _
    $region39: #{tpu_custom_call.1} parent=1 // pred_check_branch
      %104 = sbr.rel (0) target = $region41
    $region40: #{tpu_custom_call.1} parent=1 // pred_region
      %106 = dma.done [#allocation3], 256
    $region41: #{tpu_custom_call.1} parent=1 // pred_fallthru
      _
    // Predicated region
    $region42: #{tpu_custom_call.1} parent=1 // pred_check
      _
    $region43: #{tpu_custom_call.1} parent=1 // pred_check_branch
      %108 = sbr.rel (0) target = $region45
    $region44: #{tpu_custom_call.1} parent=1 // pred_region
      %110 = dma.done [#allocation6], 512
    $region45: #{tpu_custom_call.1} parent=1 // pred_fallthru
      _
    // Predicated region
    $region46: #{tpu_custom_call.1} parent=1 // pred_check
      _
    $region47: #{tpu_custom_call.1} parent=1 // pred_check_branch
      %112 = sbr.rel (0) target = $region49
    $region48: #{tpu_custom_call.1} parent=1 // pred_region
      %114 = dma.done [#allocation6], 512
    $region49: #{tpu_custom_call.1} parent=1 // pred_fallthru
      _
    // Predicated region
    $region50: #{tpu_custom_call.1} parent=1 // pred_check
      _
    $region51: #{tpu_custom_call.1} parent=1 // pred_check_branch
      %116 = sbr.rel (0) target = $region53
    $region52: #{tpu_custom_call.1} parent=1 // pred_region
      %118 = dma.done [#allocation9], 512
    $region53: #{tpu_custom_call.1} parent=1 // pred_fallthru
      _
    // Predicated region
    $region54: #{tpu_custom_call.1} parent=1 // pred_check
      _
    $region55: #{tpu_custom_call.1} parent=1 // pred_check_branch
      %120 = sbr.rel (0) target = $region57
    $region56: #{tpu_custom_call.1} parent=1 // pred_region
      %122 = dma.done [#allocation9], 512
    $region57: #{tpu_custom_call.1} parent=1 // pred_fallthru
      _
    // Predicated region
    $region58: #{tpu_custom_call.1} parent=1 // pred_check
      _
    $region59: #{tpu_custom_call.1} parent=1 // pred_check_branch
      %124 = sbr.rel (0) target = $region61
    $region60: #{tpu_custom_call.1} parent=1 // pred_region
      %126 = dma.done [#allocation12], 512
    $region61: #{tpu_custom_call.1} parent=1 // pred_fallthru
      _
    %v127 = vld [vmem:[#allocation2] sm:$0xff]
    %v128 = vld [vmem:[#allocation2 + $0x8] sm:$0xff]
    %v129 = vld [vmem:[#allocation5] sm:$0xff]
    %v130 = vld [vmem:[#allocation5 + $0x8] sm:$0xff]
    %v131 = vld [vmem:[#allocation5 + $0x10] sm:$0xff]
    %v132 = vld [vmem:[#allocation5 + $0x18] sm:$0x1]
    %v133 = vld [vmem:[%s3] sm:$0x1]
    %v135 = vperm.slane %v133, 0
    %vm137 = vcmask 203776
    %v139 = vsel %vm137, %v127, 0
    %v142 = vsel %vm137, %v128, 0
    %vm144 = vcmask 1040384
    %v146 = vsel %vm144, %v132, 0
    %148 = vmatpush.msra.mxu0 0.0
    %149 = vmatpush.msra.mxu0 0.0
    %150 = vmatpush.msra.mxu0 0.0
    %151 = vmatpush.msra.mxu0 0.0
    %152 = vmatpush.msra.mxu0 0.0
    %153 = vmatpush.msra.mxu0 0.0
    %154 = vmatpush.msra.mxu0 0.0
    %155 = vmatpush.msra.mxu0 0.0
    %156 = vmatpush.msra.mxu0 0.0
    %157 = vmatpush.msra.mxu0 0.0
    %158 = vmatpush.msra.mxu0 0.0
    %159 = vmatpush.msra.mxu0 0.0
    %160 = vmatpush.msra.mxu0 %v146
    %161 = vmatpush.msra.mxu0 %v131
    %162 = vmatpush.msra.mxu0 %v130
    %163 = vmatpush.msra.mxu0 %v129
    %164 = vmatmul.f32.gmra.mxu0 %v139
    %v165 = vpop.f32.mrf.mxu0
    %v166 = vadd.f32 %v135, %v165
    %167 = vmatmul.f32.gmra.mxu0 %v142
    %v168 = vpop.f32.mrf.mxu0
    %v169 = vadd.f32 %v135, %v168
    %170 = vdwg.mxu0
    %v171 = vld [vmem:[#allocation7] sm:$0xff]
    %v172 = vld [vmem:[#allocation7 + $0x8] sm:$0xff]
    %v173 = vld [vmem:[#allocation7 + $0x10] sm:$0xff]
    %v174 = vld [vmem:[#allocation7 + $0x18] sm:$0x1]
    %v175 = vtanh.pop %v166
    %v176 = vtanh.pop %v169
    %v179 = vrot.slane %v176, 7
    %vm180 = vcmask 1041409
    %v181 = vsel %vm180, %v179, %v175
    %v182 = vsel %vm137, %v181, 0
    %v185 = vsel %vm144, %v174, 0
    %187 = vmatpush.msra.mxu0 0.0
    %188 = vmatpush.msra.mxu0 0.0
    %189 = vmatpush.msra.mxu0 0.0
    %190 = vmatpush.msra.mxu0 0.0
    %191 = vmatpush.msra.mxu0 0.0
    %192 = vmatpush.msra.mxu0 0.0
    %193 = vmatpush.msra.mxu0 0.0
    %194 = vmatpush.msra.mxu0 0.0
    %195 = vmatpush.msra.mxu0 0.0
    %196 = vmatpush.msra.mxu0 0.0
    %197 = vmatpush.msra.mxu0 0.0
    %198 = vmatpush.msra.mxu0 0.0
    %199 = vmatpush.msra.mxu0 %v185
    %200 = vmatpush.msra.mxu0 %v173
    %201 = vmatpush.msra.mxu0 %v172
    %202 = vmatpush.msra.mxu0 %v171
    %203 = vmatmul.f32.gmra.mxu0 %v182
    %v204 = vpop.f32.mrf.mxu0
    %v205 = vadd.f32 0.0, %v204
    %206 = vdwg.mxu0
    %v208 = vrot.slane %v205, 7
    %v211 = vadd.f32 %v166, %v208
    %v212 = vadd.f32 %v169, %v205
    %v213 = vtanh.pop %v211
    %v214 = vtanh.pop %v212
    %v217 = vrot.slane %v213, 1
    %v218 = vsel %vm180, %v214, %v217
    %v219 = vsel %vm137, %v218, 0
    %221 = vmatpush.msra.mxu0 0.0
    %222 = vmatpush.msra.mxu0 0.0
    %223 = vmatpush.msra.mxu0 0.0
    %224 = vmatpush.msra.mxu0 0.0
    %225 = vmatpush.msra.mxu0 0.0
    %226 = vmatpush.msra.mxu0 0.0
    %227 = vmatpush.msra.mxu0 0.0
    %228 = vmatpush.msra.mxu0 0.0
    %229 = vmatpush.msra.mxu0 0.0
    %230 = vmatpush.msra.mxu0 0.0
    %231 = vmatpush.msra.mxu0 0.0
    %232 = vmatpush.msra.mxu0 0.0
    %233 = vmatpush.msra.mxu0 %v185
    %234 = vmatpush.msra.mxu0 %v173
    %235 = vmatpush.msra.mxu0 %v172
    %236 = vmatpush.msra.mxu0 %v171
    %237 = vmatmul.f32.gmra.mxu0 %v219
    %v238 = vpop.f32.mrf.mxu0
    %v239 = vadd.f32 0.0, %v238
    %240 = vdwg.mxu0
    %v242 = vrot.slane %v239, 6
    %v243 = vrot.slane %v239, 7
    %v246 = vadd.f32 %v166, %v242
    %v247 = vadd.f32 %v169, %v243
    %v248 = vtanh.pop %v246
    %v249 = vtanh.pop %v247
    %v252 = vrot.slane %v248, 2
    %v253 = vrot.slane %v249, 1
    %v254 = vsel %vm180, %v253, %v252
    %v255 = vsel %vm137, %v254, 0
    %257 = vmatpush.msra.mxu0 0.0
    %258 = vmatpush.msra.mxu0 0.0
    %259 = vmatpush.msra.mxu0 0.0
    %260 = vmatpush.msra.mxu0 0.0
    %261 = vmatpush.msra.mxu0 0.0
    %262 = vmatpush.msra.mxu0 0.0
    %263 = vmatpush.msra.mxu0 0.0
    %264 = vmatpush.msra.mxu0 0.0
    %265 = vmatpush.msra.mxu0 0.0
    %266 = vmatpush.msra.mxu0 0.0
    %267 = vmatpush.msra.mxu0 0.0
    %268 = vmatpush.msra.mxu0 0.0
    %269 = vmatpush.msra.mxu0 %v185
    %270 = vmatpush.msra.mxu0 %v173
    %271 = vmatpush.msra.mxu0 %v172
    %272 = vmatpush.msra.mxu0 %v171
    %273 = vmatmul.f32.gmra.mxu0 %v255
    %v274 = vpop.f32.mrf.mxu0
    %v275 = vadd.f32 0.0, %v274
    %276 = vdwg.mxu0
    %v278 = vrot.slane %v275, 5
    %v279 = vrot.slane %v275, 6
    %v282 = vadd.f32 %v166, %v278
    %v283 = vadd.f32 %v169, %v279
    %v284 = vtanh.pop %v282
    %v285 = vtanh.pop %v283
    %v288 = vrot.slane %v284, 3
    %v289 = vrot.slane %v285, 2
    %v290 = vsel %vm180, %v289, %v288
    %v291 = vsel %vm137, %v290, 0
    %293 = vmatpush.msra.mxu0 0.0
    %294 = vmatpush.msra.mxu0 0.0
    %295 = vmatpush.msra.mxu0 0.0
    %296 = vmatpush.msra.mxu0 0.0
    %297 = vmatpush.msra.mxu0 0.0
    %298 = vmatpush.msra.mxu0 0.0
    %299 = vmatpush.msra.mxu0 0.0
    %300 = vmatpush.msra.mxu0 0.0
    %301 = vmatpush.msra.mxu0 0.0
    %302 = vmatpush.msra.mxu0 0.0
    %303 = vmatpush.msra.mxu0 0.0
    %304 = vmatpush.msra.mxu0 0.0
    %305 = vmatpush.msra.mxu0 %v185
    %306 = vmatpush.msra.mxu0 %v173
    %307 = vmatpush.msra.mxu0 %v172
    %308 = vmatpush.msra.mxu0 %v171
    %309 = vmatmul.f32.gmra.mxu0 %v291
    %v310 = vpop.f32.mrf.mxu0
    %v311 = vadd.f32 0.0, %v310
    %312 = vdwg.mxu0
    %v314 = vrot.slane %v311, 4
    %v315 = vrot.slane %v311, 5
    %v318 = vadd.f32 %v166, %v314
    %v319 = vadd.f32 %v169, %v315
    %v320 = vtanh.pop %v318
    %v321 = vtanh.pop %v319
    %v324 = vrot.slane %v320, 4
    %v325 = vrot.slane %v321, 3
    %v326 = vsel %vm180, %v325, %v324
    %v327 = vsel %vm137, %v326, 0
    %329 = vmatpush.msra.mxu0 0.0
    %330 = vmatpush.msra.mxu0 0.0
    %331 = vmatpush.msra.mxu0 0.0
    %332 = vmatpush.msra.mxu0 0.0
    %333 = vmatpush.msra.mxu0 0.0
    %334 = vmatpush.msra.mxu0 0.0
    %335 = vmatpush.msra.mxu0 0.0
    %336 = vmatpush.msra.mxu0 0.0
    %337 = vmatpush.msra.mxu0 0.0
    %338 = vmatpush.msra.mxu0 0.0
    %339 = vmatpush.msra.mxu0 0.0
    %340 = vmatpush.msra.mxu0 0.0
    %341 = vmatpush.msra.mxu0 %v185
    %342 = vmatpush.msra.mxu0 %v173
    %343 = vmatpush.msra.mxu0 %v172
    %344 = vmatpush.msra.mxu0 %v171
    %345 = vmatmul.f32.gmra.mxu0 %v327
    %v346 = vpop.f32.mrf.mxu0
    %v347 = vadd.f32 0.0, %v346
    %348 = vdwg.mxu0
    %v350 = vrot.slane %v347, 3
    %v351 = vrot.slane %v347, 4
    %v354 = vadd.f32 %v166, %v350
    %v355 = vadd.f32 %v169, %v351
    %v356 = vtanh.pop %v354
    %v357 = vtanh.pop %v355
    %v360 = vrot.slane %v356, 5
    %v361 = vrot.slane %v357, 4
    %v362 = vsel %vm180, %v361, %v360
    %v363 = vsel %vm137, %v362, 0
    %365 = vmatpush.msra.mxu0 0.0
    %366 = vmatpush.msra.mxu0 0.0
    %367 = vmatpush.msra.mxu0 0.0
    %368 = vmatpush.msra.mxu0 0.0
    %369 = vmatpush.msra.mxu0 0.0
    %370 = vmatpush.msra.mxu0 0.0
    %371 = vmatpush.msra.mxu0 0.0
    %372 = vmatpush.msra.mxu0 0.0
    %373 = vmatpush.msra.mxu0 0.0
    %374 = vmatpush.msra.mxu0 0.0
    %375 = vmatpush.msra.mxu0 0.0
    %376 = vmatpush.msra.mxu0 0.0
    %377 = vmatpush.msra.mxu0 %v185
    %378 = vmatpush.msra.mxu0 %v173
    %379 = vmatpush.msra.mxu0 %v172
    %380 = vmatpush.msra.mxu0 %v171
    %381 = vmatmul.f32.gmra.mxu0 %v363
    %v382 = vpop.f32.mrf.mxu0
    %v383 = vadd.f32 0.0, %v382
    %384 = vdwg.mxu0
    %v386 = vrot.slane %v383, 2
    %v387 = vrot.slane %v383, 3
    %v390 = vadd.f32 %v166, %v386
    %v391 = vadd.f32 %v169, %v387
    %v392 = vtanh.pop %v390
    %v393 = vtanh.pop %v391
    %v396 = vrot.slane %v392, 6
    %v397 = vrot.slane %v393, 5
    %v398 = vsel %vm180, %v397, %v396
    %v399 = vsel %vm137, %v398, 0
    %401 = vmatpush.msra.mxu0 0.0
    %402 = vmatpush.msra.mxu0 0.0
    %403 = vmatpush.msra.mxu0 0.0
    %404 = vmatpush.msra.mxu0 0.0
    %405 = vmatpush.msra.mxu0 0.0
    %406 = vmatpush.msra.mxu0 0.0
    %407 = vmatpush.msra.mxu0 0.0
    %408 = vmatpush.msra.mxu0 0.0
    %409 = vmatpush.msra.mxu0 0.0
    %410 = vmatpush.msra.mxu0 0.0
    %411 = vmatpush.msra.mxu0 0.0
    %412 = vmatpush.msra.mxu0 0.0
    %413 = vmatpush.msra.mxu0 %v185
    %414 = vmatpush.msra.mxu0 %v173
    %415 = vmatpush.msra.mxu0 %v172
    %416 = vmatpush.msra.mxu0 %v171
    %417 = vmatmul.f32.gmra.mxu0 %v399
    %v418 = vpop.f32.mrf.mxu0
    %v419 = vadd.f32 0.0, %v418
    %420 = vdwg.mxu0
    %v422 = vrot.slane %v419, 1
    %v423 = vrot.slane %v419, 2
    %v426 = vadd.f32 %v166, %v422
    %v427 = vadd.f32 %v169, %v423
    %v428 = vtanh.pop %v426
    %v429 = vtanh.pop %v427
    %v430 = vsel %vm144, %v175, %v213
    %v431 = vsel %vm144, %v176, %v214
    %vm432 = vcmask 1041408
    %v433 = vsel %vm432, %v430, %v248
    %v434 = vsel %vm432, %v431, %v249
    %vm435 = vcmask 1042432
    %v436 = vsel %vm435, %v433, %v284
    %v437 = vsel %vm435, %v434, %v285
    %vm438 = vcmask 1043456
    %v439 = vsel %vm438, %v436, %v320
    %v440 = vsel %vm438, %v437, %v321
    %vm441 = vcmask 1044480
    %v442 = vsel %vm441, %v439, %v356
    %v443 = vsel %vm441, %v440, %v357
    %vm444 = vcmask 1045504
    %v445 = vsel %vm444, %v442, %v392
    %v446 = vsel %vm444, %v443, %v393
    %vm447 = vcmask 1046528
    %v448 = vsel %vm447, %v445, %v428
    %v449 = vsel %vm447, %v446, %v429
    %v450 = vld [vmem:[#allocation8] sm:$0xff]
    %v451 = vld [vmem:[#allocation8 + $0x8] sm:$0xff]
    %v452 = vld [vmem:[#allocation8 + $0x10] sm:$0xff]
    %v453 = vld [vmem:[#allocation8 + $0x18] sm:$0x1]
    %v454 = vld [vmem:[%s6] sm:$0x1]
    %v456 = vperm.slane %v454, 0
    %v459 = vsel %vm137, %v448, 0
    %v462 = vsel %vm137, %v449, 0
    %v465 = vsel %vm144, %v453, 0
    %467 = vmatpush.msra.mxu0 0.0
    %468 = vmatpush.msra.mxu0 0.0
    %469 = vmatpush.msra.mxu0 0.0
    %470 = vmatpush.msra.mxu0 0.0
    %471 = vmatpush.msra.mxu0 0.0
    %472 = vmatpush.msra.mxu0 0.0
    %473 = vmatpush.msra.mxu0 0.0
    %474 = vmatpush.msra.mxu0 0.0
    %475 = vmatpush.msra.mxu0 0.0
    %476 = vmatpush.msra.mxu0 0.0
    %477 = vmatpush.msra.mxu0 0.0
    %478 = vmatpush.msra.mxu0 0.0
    %479 = vmatpush.msra.mxu0 %v465
    %480 = vmatpush.msra.mxu0 %v452
    %481 = vmatpush.msra.mxu0 %v451
    %482 = vmatpush.msra.mxu0 %v450
    %483 = vmatmul.f32.gmra.mxu0 %v459
    %v484 = vpop.f32.mrf.mxu0
    %v485 = vadd.f32 %v456, %v484
    %486 = vmatmul.f32.gmra.mxu0 %v462
    %v487 = vpop.f32.mrf.mxu0
    %v488 = vadd.f32 %v456, %v487
    %489 = vdwg.mxu0
    %v490 = vld [vmem:[#allocation10] sm:$0xff]
    %v491 = vld [vmem:[#allocation10 + $0x8] sm:$0xff]
    %v492 = vld [vmem:[#allocation10 + $0x10] sm:$0xff]
    %v493 = vld [vmem:[#allocation10 + $0x18] sm:$0x1]
    %v494 = vtanh.pop %v485
    %v495 = vtanh.pop %v488
    %v498 = vrot.slane %v495, 7
    %v499 = vsel %vm180, %v498, %v494
    %v500 = vsel %vm137, %v499, 0
    %v503 = vsel %vm144, %v493, 0
    %505 = vmatpush.msra.mxu0 0.0
    %506 = vmatpush.msra.mxu0 0.0
    %507 = vmatpush.msra.mxu0 0.0
    %508 = vmatpush.msra.mxu0 0.0
    %509 = vmatpush.msra.mxu0 0.0
    %510 = vmatpush.msra.mxu0 0.0
    %511 = vmatpush.msra.mxu0 0.0
    %512 = vmatpush.msra.mxu0 0.0
    %513 = vmatpush.msra.mxu0 0.0
    %514 = vmatpush.msra.mxu0 0.0
    %515 = vmatpush.msra.mxu0 0.0
    %516 = vmatpush.msra.mxu0 0.0
    %517 = vmatpush.msra.mxu0 %v503
    %518 = vmatpush.msra.mxu0 %v492
    %519 = vmatpush.msra.mxu0 %v491
    %520 = vmatpush.msra.mxu0 %v490
    %521 = vmatmul.f32.gmra.mxu0 %v500
    %v522 = vpop.f32.mrf.mxu0
    %v523 = vadd.f32 0.0, %v522
    %524 = vdwg.mxu0
    %v526 = vrot.slane %v523, 7
    %v529 = vadd.f32 %v485, %v526
    %v530 = vadd.f32 %v488, %v523
    %v531 = vtanh.pop %v529
    %v532 = vtanh.pop %v530
    %v535 = vrot.slane %v531, 1
    %v536 = vsel %vm180, %v532, %v535
    %v537 = vsel %vm137, %v536, 0
    %539 = vmatpush.msra.mxu0 0.0
    %540 = vmatpush.msra.mxu0 0.0
    %541 = vmatpush.msra.mxu0 0.0
    %542 = vmatpush.msra.mxu0 0.0
    %543 = vmatpush.msra.mxu0 0.0
    %544 = vmatpush.msra.mxu0 0.0
    %545 = vmatpush.msra.mxu0 0.0
    %546 = vmatpush.msra.mxu0 0.0
    %547 = vmatpush.msra.mxu0 0.0
    %548 = vmatpush.msra.mxu0 0.0
    %549 = vmatpush.msra.mxu0 0.0
    %550 = vmatpush.msra.mxu0 0.0
    %551 = vmatpush.msra.mxu0 %v503
    %552 = vmatpush.msra.mxu0 %v492
    %553 = vmatpush.msra.mxu0 %v491
    %554 = vmatpush.msra.mxu0 %v490
    %555 = vmatmul.f32.gmra.mxu0 %v537
    %v556 = vpop.f32.mrf.mxu0
    %v557 = vadd.f32 0.0, %v556
    %558 = vdwg.mxu0
    %v560 = vrot.slane %v557, 6
    %v561 = vrot.slane %v557, 7
    %v564 = vadd.f32 %v485, %v560
    %v565 = vadd.f32 %v488, %v561
    %v566 = vtanh.pop %v564
    %v567 = vtanh.pop %v565
    %v570 = vrot.slane %v566, 2
    %v571 = vrot.slane %v567, 1
    %v572 = vsel %vm180, %v571, %v570
    %v573 = vsel %vm137, %v572, 0
    %575 = vmatpush.msra.mxu0 0.0
    %576 = vmatpush.msra.mxu0 0.0
    %577 = vmatpush.msra.mxu0 0.0
    %578 = vmatpush.msra.mxu0 0.0
    %579 = vmatpush.msra.mxu0 0.0
    %580 = vmatpush.msra.mxu0 0.0
    %581 = vmatpush.msra.mxu0 0.0
    %582 = vmatpush.msra.mxu0 0.0
    %583 = vmatpush.msra.mxu0 0.0
    %584 = vmatpush.msra.mxu0 0.0
    %585 = vmatpush.msra.mxu0 0.0
    %586 = vmatpush.msra.mxu0 0.0
    %587 = vmatpush.msra.mxu0 %v503
    %588 = vmatpush.msra.mxu0 %v492
    %589 = vmatpush.msra.mxu0 %v491
    %590 = vmatpush.msra.mxu0 %v490
    %591 = vmatmul.f32.gmra.mxu0 %v573
    %v592 = vpop.f32.mrf.mxu0
    %v593 = vadd.f32 0.0, %v592
    %594 = vdwg.mxu0
    %v596 = vrot.slane %v593, 5
    %v597 = vrot.slane %v593, 6
    %v600 = vadd.f32 %v485, %v596
    %v601 = vadd.f32 %v488, %v597
    %v602 = vtanh.pop %v600
    %v603 = vtanh.pop %v601
    %v606 = vrot.slane %v602, 3
    %v607 = vrot.slane %v603, 2
    %v608 = vsel %vm180, %v607, %v606
    %v609 = vsel %vm137, %v608, 0
    %611 = vmatpush.msra.mxu0 0.0
    %612 = vmatpush.msra.mxu0 0.0
    %613 = vmatpush.msra.mxu0 0.0
    %614 = vmatpush.msra.mxu0 0.0
    %615 = vmatpush.msra.mxu0 0.0
    %616 = vmatpush.msra.mxu0 0.0
    %617 = vmatpush.msra.mxu0 0.0
    %618 = vmatpush.msra.mxu0 0.0
    %619 = vmatpush.msra.mxu0 0.0
    %620 = vmatpush.msra.mxu0 0.0
    %621 = vmatpush.msra.mxu0 0.0
    %622 = vmatpush.msra.mxu0 0.0
    %623 = vmatpush.msra.mxu0 %v503
    %624 = vmatpush.msra.mxu0 %v492
    %625 = vmatpush.msra.mxu0 %v491
    %626 = vmatpush.msra.mxu0 %v490
    %627 = vmatmul.f32.gmra.mxu0 %v609
    %v628 = vpop.f32.mrf.mxu0
    %v629 = vadd.f32 0.0, %v628
    %630 = vdwg.mxu0
    %v632 = vrot.slane %v629, 4
    %v633 = vrot.slane %v629, 5
    %v636 = vadd.f32 %v485, %v632
    %v637 = vadd.f32 %v488, %v633
    %v638 = vtanh.pop %v636
    %v639 = vtanh.pop %v637
    %v642 = vrot.slane %v638, 4
    %v643 = vrot.slane %v639, 3
    %v644 = vsel %vm180, %v643, %v642
    %v645 = vsel %vm137, %v644, 0
    %647 = vmatpush.msra.mxu0 0.0
    %648 = vmatpush.msra.mxu0 0.0
    %649 = vmatpush.msra.mxu0 0.0
    %650 = vmatpush.msra.mxu0 0.0
    %651 = vmatpush.msra.mxu0 0.0
    %652 = vmatpush.msra.mxu0 0.0
    %653 = vmatpush.msra.mxu0 0.0
    %654 = vmatpush.msra.mxu0 0.0
    %655 = vmatpush.msra.mxu0 0.0
    %656 = vmatpush.msra.mxu0 0.0
    %657 = vmatpush.msra.mxu0 0.0
    %658 = vmatpush.msra.mxu0 0.0
    %659 = vmatpush.msra.mxu0 %v503
    %660 = vmatpush.msra.mxu0 %v492
    %661 = vmatpush.msra.mxu0 %v491
    %662 = vmatpush.msra.mxu0 %v490
    %663 = vmatmul.f32.gmra.mxu0 %v645
    %v664 = vpop.f32.mrf.mxu0
    %v665 = vadd.f32 0.0, %v664
    %666 = vdwg.mxu0
    %v668 = vrot.slane %v665, 3
    %v669 = vrot.slane %v665, 4
    %v672 = vadd.f32 %v485, %v668
    %v673 = vadd.f32 %v488, %v669
    %v674 = vtanh.pop %v672
    %v675 = vtanh.pop %v673
    %v678 = vrot.slane %v674, 5
    %v679 = vrot.slane %v675, 4
    %v680 = vsel %vm180, %v679, %v678
    %v681 = vsel %vm137, %v680, 0
    %683 = vmatpush.msra.mxu0 0.0
    %684 = vmatpush.msra.mxu0 0.0
    %685 = vmatpush.msra.mxu0 0.0
    %686 = vmatpush.msra.mxu0 0.0
    %687 = vmatpush.msra.mxu0 0.0
    %688 = vmatpush.msra.mxu0 0.0
    %689 = vmatpush.msra.mxu0 0.0
    %690 = vmatpush.msra.mxu0 0.0
    %691 = vmatpush.msra.mxu0 0.0
    %692 = vmatpush.msra.mxu0 0.0
    %693 = vmatpush.msra.mxu0 0.0
    %694 = vmatpush.msra.mxu0 0.0
    %695 = vmatpush.msra.mxu0 %v503
    %696 = vmatpush.msra.mxu0 %v492
    %697 = vmatpush.msra.mxu0 %v491
    %698 = vmatpush.msra.mxu0 %v490
    %699 = vmatmul.f32.gmra.mxu0 %v681
    %v700 = vpop.f32.mrf.mxu0
    %v701 = vadd.f32 0.0, %v700
    %702 = vdwg.mxu0
    %v704 = vrot.slane %v701, 2
    %v705 = vrot.slane %v701, 3
    %v708 = vadd.f32 %v485, %v704
    %v709 = vadd.f32 %v488, %v705
    %v710 = vtanh.pop %v708
    %v711 = vtanh.pop %v709
    %v714 = vrot.slane %v710, 6
    %v715 = vrot.slane %v711, 5
    %v716 = vsel %vm180, %v715, %v714
    %v717 = vsel %vm137, %v716, 0
    %719 = vmatpush.msra.mxu0 0.0
    %720 = vmatpush.msra.mxu0 0.0
    %721 = vmatpush.msra.mxu0 0.0
    %722 = vmatpush.msra.mxu0 0.0
    %723 = vmatpush.msra.mxu0 0.0
    %724 = vmatpush.msra.mxu0 0.0
    %725 = vmatpush.msra.mxu0 0.0
    %726 = vmatpush.msra.mxu0 0.0
    %727 = vmatpush.msra.mxu0 0.0
    %728 = vmatpush.msra.mxu0 0.0
    %729 = vmatpush.msra.mxu0 0.0
    %730 = vmatpush.msra.mxu0 0.0
    %731 = vmatpush.msra.mxu0 %v503
    %732 = vmatpush.msra.mxu0 %v492
    %733 = vmatpush.msra.mxu0 %v491
    %734 = vmatpush.msra.mxu0 %v490
    %735 = vmatmul.f32.gmra.mxu0 %v717
    %v736 = vpop.f32.mrf.mxu0
    %v737 = vadd.f32 0.0, %v736
    %738 = vdwg.mxu0
    %v740 = vrot.slane %v737, 1
    %v741 = vrot.slane %v737, 2
    %v744 = vadd.f32 %v485, %v740
    %v745 = vadd.f32 %v488, %v741
    %v746 = vtanh.pop %v744
    %v747 = vtanh.pop %v745
    %v748 = vsel %vm144, %v494, %v531
    %v749 = vsel %vm144, %v495, %v532
    %v750 = vsel %vm432, %v748, %v566
    %v751 = vsel %vm432, %v749, %v567
    %v752 = vsel %vm435, %v750, %v602
    %v753 = vsel %vm435, %v751, %v603
    %v754 = vsel %vm438, %v752, %v638
    %v755 = vsel %vm438, %v753, %v639
    %v756 = vsel %vm441, %v754, %v674
    %v757 = vsel %vm441, %v755, %v675
    %v758 = vsel %vm444, %v756, %v710
    %v759 = vsel %vm444, %v757, %v711
    %v760 = vsel %vm447, %v758, %v746
    %v761 = vsel %vm447, %v759, %v747
    %v762 = vld [vmem:[#allocation11] sm:$0xff]
    %v763 = vld [vmem:[#allocation11 + $0x8] sm:$0xff]
    %v764 = vld [vmem:[#allocation11 + $0x10] sm:$0xff]
    %v765 = vld [vmem:[#allocation11 + $0x18] sm:$0x1]
    %v766 = vld [vmem:[%s8] sm:$0x1]
    %v768 = vperm.slane %v766, 0
    %v771 = vsel %vm137, %v760, 0
    %v774 = vsel %vm137, %v761, 0
    %v777 = vsel %vm144, %v765, 0
    %779 = vmatpush.msra.mxu0 0.0
    %780 = vmatpush.msra.mxu0 0.0
    %781 = vmatpush.msra.mxu0 0.0
    %782 = vmatpush.msra.mxu0 0.0
    %783 = vmatpush.msra.mxu0 0.0
    %784 = vmatpush.msra.mxu0 0.0
    %785 = vmatpush.msra.mxu0 0.0
    %786 = vmatpush.msra.mxu0 0.0
    %787 = vmatpush.msra.mxu0 0.0
    %788 = vmatpush.msra.mxu0 0.0
    %789 = vmatpush.msra.mxu0 0.0
    %790 = vmatpush.msra.mxu0 0.0
    %791 = vmatpush.msra.mxu0 %v777
    %792 = vmatpush.msra.mxu0 %v764
    %793 = vmatpush.msra.mxu0 %v763
    %794 = vmatpush.msra.mxu0 %v762
    %795 = vmatmul.f32.gmra.mxu0 %v771
    %v796 = vpop.f32.mrf.mxu0
    %v797 = vadd.f32 %v768, %v796
    %798 = vmatmul.f32.gmra.mxu0 %v774
    %v799 = vpop.f32.mrf.mxu0
    %v800 = vadd.f32 %v768, %v799
    %801 = vdwg.mxu0
    %802 = vst.msk [vmem:[#allocation13] sm:$0xff] %vm137, %v797
    %803 = vst.msk [vmem:[#allocation13 + $0x8] sm:$0xff] %vm137, %v800
    // Predicated region
    $region62: #{tpu_custom_call.1} parent=1 // pred_check
      _
    $region63: #{tpu_custom_call.1} parent=1 // pred_check_branch
      %805 = sbr.rel (0) target = $region65
    $region64: #{tpu_custom_call.1} parent=1 // pred_region
      %807 = vsyncadd [#allocation4], 0
      %s808 = sshll.u32 [#allocation13], 4
      %s809 = int_to_ptr.vmem [resolvable:$true] %s808
      %s810 = sshll.u32 %s9, 4
      %s811 = int_to_ptr.hbm [resolvable:$true] %s810
      %816 = dma.vmem_to_hbm [thread:$0]  %s809, 256, %s811, [#allocation4], 128, 128, 8
    $region65: #{tpu_custom_call.1} parent=1 // pred_fallthru
      _
    // Predicated region
    $region66: #{tpu_custom_call.1} parent=1 // pred_check
      _
    $region67: #{tpu_custom_call.1} parent=1 // pred_check_branch
      %818 = sbr.rel (0) target = $region69
    $region68: #{tpu_custom_call.1} parent=1 // pred_region
      %820 = dma.done [#allocation4], 256
    $region69: #{tpu_custom_call.1} parent=1 // pred_fallthru
      _
    %821 = vsyncpa [#allocation3], 1
    %822 = vsyncpa [#allocation6], 1
    %823 = vsyncpa [#allocation9], 1
    %824 = vsyncpa [#allocation12], 1
    %825 = vsyncpa [#allocation4], 1

</llo_original>
